<compile_context>
chip_gen: v7x
topology: tpu7x:2x2x1
jax: 0.10.0
libtpu: 0.0.40
codegen_flags: <defaults>
</compile_context>

<pallas_src>
import functools

import jax
import jax.numpy as jnp
from jax import lax
from jax.experimental import pallas as pl
from jax.experimental.pallas import tpu as pltpu


# ---------------------------------------------------------------------------
# Pallas kernels
# ---------------------------------------------------------------------------
def _silu(y):
    return y * jax.nn.sigmoid(y)


def _stem_kernel(x_ref, w_ref, b_ref, o_ref):
    """Fused conv1 || conv2 (both 1x1 + BN + SiLU): one matmul vs [W1 | W2].

    x_ref : (TM, Cin)     bf16 activation row tile
    w_ref : (Cin, 2*hid)  bf16 BN-scale-folded weights of conv1 and conv2
    b_ref : (1, 2*hid)    f32 folded BN bias
    o_ref : (TM, 2*hid)   bf16 lane-dense output slab [x1 | x2]
    """
    y = jnp.dot(x_ref[...], w_ref[...], preferred_element_type=jnp.float32)
    o_ref[...] = _silu(y + b_ref[...]).astype(o_ref.dtype)


def _chain_kernel(h, w, hid, nb, use_add, merge_taps,
                  x12_ref, w1_ref, b1_ref, w2_ref, b2_ref,
                  w3a_ref, w3b_ref, b3_ref, o_ref, *scratch):
    """Fused bottleneck chain + concat + conv3 for one image (spatially flat).

    x12_ref : (HW, 2*hid)             bf16, [x1 | x2] from the stem
    w1_ref  : (nb, hid, hid)          bf16, per-bottleneck 1x1 weights
    b1_ref  : (nb, 1, hid)            f32
    w2_ref  : (nb, 9*hid, hid)        bf16 (merged-tap path)   OR
              (nb, 9, hid, hid)       bf16 (per-tap path), tap = ky*3+kx
    b2_ref  : (nb, 1, hid)            f32
    w3a_ref, w3b_ref : (hid, cout)    bf16 split conv3 weights (fused concat)
    b3_ref  : (1, cout)               f32
    o_ref   : (HW, cout)              f32 layer output
    scratch : optional (HW, 9*hid) bf16 VMEM slab for the merged-tap matmul
    """
    hw = h * w
    x12 = x12_ref[...]                                  # (HW, 2*hid) bf16
    x1 = x12[:, :hid]
    x2 = x12[:, hid:]

    if nb:
        # Boundary masks for the 3x3 'same' conv, hoisted out of BOTH loops
        # (same for every tap direction and every bottleneck).
        pos = lax.broadcasted_iota(jnp.int32, (hw, 1), 0)
        h_idx = pos // w
        w_idx = pos % w
        vmask = {-1: h_idx >= 1, 0: None, 1: h_idx < h - 1}
        hmask = {-1: w_idx >= 1, 0: None, 1: w_idx < w - 1}

    for i in range(nb):
        # --- 1x1 conv + BN + SiLU; intermediate stays in VMEM.
        y = jnp.dot(x1, w1_ref[i], preferred_element_type=jnp.float32)
        y = _silu(y + b1_ref[i])                        # (HW, hid) f32

        # --- 3x3 'same' conv. Tap (ky,kx) needs y[h+ky-1, w+kx-1]; on the
        # flattened spatial axis that is an XLU roll by (ky-1)*W + (kx-1),
        # with out-of-image rows zeroed (reproduces zero padding).
        acc = None
        for ky in range(3):
            for kx in range(3):
                oy, ox = ky - 1, kx - 1
                shift = (-(oy * w + ox)) % hw
                tap = pltpu.roll(y, shift, axis=0) if shift else y
                m = vmask[oy]
                if hmask[ox] is not None:
                    m = hmask[ox] if m is None else (m & hmask[ox])
                if m is not None:
                    tap = jnp.where(m, tap, 0.0)
                t = ky * 3 + kx
                if merge_taps:
                    # Build one lane-contiguous (HW, 9*hid) bf16 slab in VMEM
                    # and do a single deep-K matmul below.
                    scratch[0][:, t * hid:(t + 1) * hid] = tap.astype(jnp.bfloat16)
                else:
                    d = jnp.dot(tap.astype(jnp.bfloat16), w2_ref[i, t],
                                preferred_element_type=jnp.float32)
                    acc = d if acc is None else acc + d
        if merge_taps:
            acc = jnp.dot(scratch[0][...], w2_ref[i],
                          preferred_element_type=jnp.float32)

        z = _silu(acc + b2_ref[i])
        if use_add:
            z = z + x1.astype(jnp.float32)              # residual = input tile
        x1 = z.astype(jnp.bfloat16)

    # --- fused torch.cat((x1, x2), 1) + conv3 (1x1 + BN + SiLU).
    out = (jnp.dot(x1, w3a_ref[...], preferred_element_type=jnp.float32)
           + jnp.dot(x2, w3b_ref[...], preferred_element_type=jnp.float32))
    o_ref[...] = _silu(out + b3_ref[...]).astype(o_ref.dtype)


# ---------------------------------------------------------------------------
# Pallas wrappers
# ---------------------------------------------------------------------------
_CP_PAR = pltpu.CompilerParams(
    dimension_semantics=("parallel",),
    vmem_limit_bytes=32 * 1024 * 1024,   # raise v5e's 16 MiB default; ok on v7x
)


def _pick_tile_m(m):
    """Largest row tile <= 1024 that divides m and leaves >= 2 grid steps
    (double-buffered pipeline + both v7x TensorCores busy)."""
    for t in (1024, 512, 256, 128, 64, 32, 16, 8):
        if m % t == 0 and m // t >= 2:
            return t
    # Awkward M: uneven pl.cdiv grid (masked final block) rather than one
    # giant unpipelined single block.
    return min(m, 1024)


def _fused_stem(x2d_bf16, params):
    """conv1 || conv2 (1x1 + BN + SiLU), tiled over M. Returns (M, 2*hid) bf16."""
    m, cin = x2d_bf16.shape
    hid = params["conv1"]["w"].shape[1]
    w12 = jnp.concatenate(
        [params["conv1"]["w"] * params["conv1"]["scale"][None, :],
         params["conv2"]["w"] * params["conv2"]["scale"][None, :]],
        axis=1).astype(jnp.bfloat16)
    b12 = jnp.concatenate([params["conv1"]["bias"],
                           params["conv2"]["bias"]]).reshape(1, 2 * hid)
    tm = _pick_tile_m(m)
    return pl.pallas_call(
        _stem_kernel,
        grid=(pl.cdiv(m, tm),),
        out_shape=jax.ShapeDtypeStruct((m, 2 * hid), jnp.bfloat16),
        in_specs=[pl.BlockSpec((tm, cin), lambda i: (i, 0)),
                  pl.BlockSpec((cin, 2 * hid), lambda i: (0, 0)),
                  pl.BlockSpec((1, 2 * hid), lambda i: (0, 0))],
        out_specs=pl.BlockSpec((tm, 2 * hid), lambda i: (i, 0)),
        compiler_params=_CP_PAR,
    )(x2d_bf16, w12, b12)


def _fused_chain_merge(x12, n, h, w, params, shortcut):
    """Bottleneck chain + concat + conv3 fully fused; one image per grid step."""
    hw = h * w
    hid = params["conv1"]["w"].shape[1]
    cout = params["conv3"]["w"].shape[1]
    mlist = params["m"]
    nb = len(mlist)

    if nb:
        w1_stack = jnp.stack([bp["conv1"]["w"] * bp["conv1"]["scale"][None, :]
                              for bp in mlist]).astype(jnp.bfloat16)
        b1_stack = jnp.stack([bp["conv1"]["bias"].reshape(1, hid) for bp in mlist])
        w2_stack = jnp.stack([bp["conv2"]["w"] * bp["conv2"]["scale"][None, None, :]
                              for bp in mlist]).astype(jnp.bfloat16)  # (nb,9,hid,hid)
        b2_stack = jnp.stack([bp["conv2"]["bias"].reshape(1, hid) for bp in mlist])
    else:  # degenerate n=0: dummies, the in-kernel loop runs 0 times
        w1_stack = jnp.zeros((1, hid, hid), jnp.bfloat16)
        b1_stack = jnp.zeros((1, 1, hid), jnp.float32)
        w2_stack = jnp.zeros((1, 9, hid, hid), jnp.bfloat16)
        b2_stack = jnp.zeros((1, 1, hid), jnp.float32)

    # Merge the 9 shallow-K tap matmuls into one K=9*hid matmul when the bf16
    # slab fits a small VMEM budget (fills the 256-deep v6e/v7x MXU; use a
    # 128 threshold on v5e).
    merge_taps = nb > 0 and hid <= 256 and (9 * hid * hw * 2) <= (4 << 20)
    if merge_taps:
        w2_stack = w2_stack.reshape(w2_stack.shape[0], 9 * hid, hid)
    w2_idx = (lambda b: (0, 0, 0)) if merge_taps else (lambda b: (0, 0, 0, 0))

    w3 = (params["conv3"]["w"] * params["conv3"]["scale"][None, :]).astype(jnp.bfloat16)
    w3a, w3b = w3[:hid], w3[hid:]
    b3 = params["conv3"]["bias"].reshape(1, cout)

    kernel = functools.partial(_chain_kernel, h, w, hid, nb, shortcut, merge_taps)
    scratch = [pltpu.VMEM((hw, 9 * hid), jnp.bfloat16)] if merge_taps else []

    return pl.pallas_call(
        kernel,
        grid=(n,),
        out_shape=jax.ShapeDtypeStruct((n * hw, cout), jnp.float32),
        in_specs=[pl.BlockSpec((hw, 2 * hid), lambda b: (b, 0)),
                  pl.BlockSpec(w1_stack.shape, lambda b: (0, 0, 0)),
                  pl.BlockSpec(b1_stack.shape, lambda b: (0, 0, 0)),
                  pl.BlockSpec(w2_stack.shape, w2_idx),
                  pl.BlockSpec(b2_stack.shape, lambda b: (0, 0, 0)),
                  pl.BlockSpec((hid, cout), lambda b: (0, 0)),
                  pl.BlockSpec((hid, cout), lambda b: (0, 0)),
                  pl.BlockSpec((1, cout), lambda b: (0, 0))],
        out_specs=pl.BlockSpec((hw, cout), lambda b: (b, 0)),
        scratch_shapes=scratch,
        compiler_params=_CP_PAR,
    )(x12, w1_stack, b1_stack, w2_stack, b2_stack, w3a, w3b, b3)


# ---------------------------------------------------------------------------
# Parameter construction (deterministic, synthetic) + BN folding
# ---------------------------------------------------------------------------
def _fold_bn(gamma, beta, mean, var, eps=1e-5):
    scale = gamma / jnp.sqrt(var + eps)
    bias = beta - mean * scale
    return scale, bias


def _make_base_conv_params(key, cin, cout, ksize):
    kw, kg, kb, km, kv = jax.random.split(key, 5)
    if ksize == 1:
        w = jax.random.normal(kw, (cin, cout), jnp.float32) * 0.1
    else:  # 3x3 -> (9, Cin, Cout), tap index = ky*3 + kx
        w = jax.random.normal(kw, (9, cin, cout), jnp.float32) * 0.1
    gamma = 1.0 + 0.1 * jax.random.normal(kg, (cout,), jnp.float32)
    beta = 0.1 * jax.random.normal(kb, (cout,), jnp.float32)
    mean = 0.1 * jax.random.normal(km, (cout,), jnp.float32)
    var = 0.5 + jnp.abs(jax.random.normal(kv, (cout,), jnp.float32))
    scale, bias = _fold_bn(gamma, beta, mean, var)
    return {"w": w, "scale": scale, "bias": bias}


def make_csp_params(key, in_channels, out_channels, n=1, expansion=0.5):
    hidden = int(out_channels * expansion)
    keys = jax.random.split(key, 3 + 2 * n)
    params = {
        "conv1": _make_base_conv_params(keys[0], in_channels, hidden, 1),
        "conv2": _make_base_conv_params(keys[1], in_channels, hidden, 1),
        "conv3": _make_base_conv_params(keys[2], 2 * hidden, out_channels, 1),
        "m": [],
    }
    for i in range(n):
        # Bottleneck(hidden, hidden, shortcut, expansion=1.0)
        params["m"].append({
            "conv1": _make_base_conv_params(keys[3 + 2 * i], hidden, hidden, 1),
            "conv2": _make_base_conv_params(keys[4 + 2 * i], hidden, hidden, 3),
        })
    return params


# ---------------------------------------------------------------------------
# CSPLayer forward (Pallas)
# ---------------------------------------------------------------------------
def csp_layer_forward(x_nchw, params, shortcut=True):
    # bf16 cast fuses into the NCHW->NHWC transpose (halves the intermediate
    # HBM traffic into the stem kernel); all matmuls accumulate in f32.
    x = jnp.transpose(x_nchw, (0, 2, 3, 1)).astype(jnp.bfloat16)   # -> NHWC bf16
    n, h, w, cin = x.shape
    x2d = x.reshape(n * h * w, cin)

    x12 = _fused_stem(x2d, params)                                  # (M, 2*hid) bf16
    out2d = _fused_chain_merge(x12, n, h, w, params, shortcut)      # (M, cout) f32

    out = out2d.reshape(n, h, w, -1)
    return jnp.transpose(out, (0, 3, 1, 2))                         # back to NCHW


# ---------------------------------------------------------------------------
# Pure-JAX f32 reference (for correctness check)
# ---------------------------------------------------------------------------
def _ref_conv_bn_silu(x_nhwc, w, scale, bias, ksize):
    cin = x_nhwc.shape[-1]
    cout = w.shape[-1]
    w_hwio = w.reshape(1, 1, cin, cout) if ksize == 1 else w.reshape(3, 3, cin, cout)
    y = lax.conv_general_dilated(
        x_nhwc, w_hwio, window_strides=(1, 1), padding="SAME",
        dimension_numbers=("NHWC", "HWIO", "NHWC"))
    y = y * scale + bias
    return y * jax.nn.sigmoid(y)


def csp_layer_ref(x_nchw, params, shortcut=True):
    x = jnp.transpose(x_nchw, (0, 2, 3, 1)).astype(jnp.float32)
    x1 = _ref_conv_bn_silu(x, params["conv1"]["w"], params["conv1"]["scale"],
                           params["conv1"]["bias"], 1)
    x2 = _ref_conv_bn_silu(x, params["conv2"]["w"], params["conv2"]["scale"],
                           params["conv2"]["bias"], 1)
    for bp in params["m"]:
        y = _ref_conv_bn_silu(x1, bp["conv1"]["w"], bp["conv1"]["scale"],
                              bp["conv1"]["bias"], 1)
        y = _ref_conv_bn_silu(y, bp["conv2"]["w"], bp["conv2"]["scale"],
                              bp["conv2"]["bias"], 3)
        x1 = y + x1 if shortcut else y
    xcat = jnp.concatenate([x1, x2], axis=-1)
    out = _ref_conv_bn_silu(xcat, params["conv3"]["w"],
                            params["conv3"]["scale"], params["conv3"]["bias"], 1)
    return jnp.transpose(out, (0, 3, 1, 2))


# ---------------------------------------------------------------------------
if __name__ == "__main__":
    def _run(cfg_key, n_img, c_in, c_out, h, w, nb, shortcut):
        kx, kp = jax.random.split(cfg_key)
        x = jax.random.normal(kx, (n_img, c_in, h, w), jnp.float32)  # NCHW
        params = make_csp_params(kp, c_in, c_out, n=nb)
        out = jax.block_until_ready(csp_layer_forward(x, params, shortcut=shortcut))
        ref = jax.block_until_ready(csp_layer_ref(x, params, shortcut=shortcut))
        assert out.shape == (n_img, c_out, h, w), out.shape
        err = float(jnp.max(jnp.abs(out - ref)))
        scale = float(jnp.max(jnp.abs(ref)))
        # bf16 operands / f32 accumulation -> loosened, scale-aware tolerance
        assert err <= 5e-2 * (1.0 + scale), (err, scale)

    key = jax.random.PRNGKey(0)
    k1, k2 = jax.random.split(key)
    # tiny config: CSPLayer(16, 16, n=2)
    _run(k1, 2, 16, 16, 16, 16, 2, True)
    # wider channels (hid=64 exercises lane-dense paths) + odd spatial height
    _run(k2, 2, 64, 128, 13, 16, 1, True)

    print("KERNEL_OK")
</pallas_src>

<mosaic_0001>
module attributes {stable_mosaic.version = 11 : i64} {
  func.func @_stem_kernel(%arg0: i32, %arg1: memref<256x16xbf16, #tpu.memory_space<vmem>>, %arg2: memref<16x16xbf16, #tpu.memory_space<vmem>>, %arg3: memref<1x16xf32, #tpu.memory_space<vmem>>, %arg4: memref<256x16xbf16, #tpu.memory_space<vmem>>) attributes {dimension_semantics = [#tpu.dimension_semantics<parallel>], iteration_bounds = array<i64: 2>, scalar_prefetch = 0 : i64, scratch_operands = 0 : i64, tpu.core_type = #tpu.core_type<tc>, window_params = [{transform_indices = @transform_0, window_bounds = array<i64: 256, 16>}, {pipeline_mode = #tpu.pipeline_mode<synchronous>, transform_indices = @transform_1, window_bounds = array<i64: 16, 16>}, {pipeline_mode = #tpu.pipeline_mode<synchronous>, transform_indices = @transform_2, window_bounds = array<i64: 1, 16>}, {transform_indices = @transform_3, window_bounds = array<i64: 256, 16>}]} {
    %c0 = arith.constant 0 : index
    %c0_0 = arith.constant 0 : index
    %0 = vector.load %arg1[%c0, %c0_0] : memref<256x16xbf16, #tpu.memory_space<vmem>>, vector<256x16xbf16>
    %c0_1 = arith.constant 0 : index
    %c0_2 = arith.constant 0 : index
    %1 = vector.load %arg2[%c0_1, %c0_2] : memref<16x16xbf16, #tpu.memory_space<vmem>>, vector<16x16xbf16>
    %cst = arith.constant dense<0.000000e+00> : vector<256x16xf32>
    %2 = tpu.matmul %0, %1, %cst {dimension_numbers = #tpu.dot_dimension_numbers<[1], [0], [0], [1], [0, 0, 1, 1], [], []>} : vector<256x16xbf16>, vector<16x16xbf16>, vector<256x16xf32> -> vector<256x16xf32>
    %c0_3 = arith.constant 0 : index
    %c0_4 = arith.constant 0 : index
    %3 = vector.load %arg3[%c0_3, %c0_4] : memref<1x16xf32, #tpu.memory_space<vmem>>, vector<1x16xf32>
    %4 = vector.broadcast %3 : vector<1x16xf32> to vector<256x16xf32>
    %5 = arith.addf %2, %4 : vector<256x16xf32>
    %6 = arith.negf %5 : vector<256x16xf32>
    %7 = math.exp %6 : vector<256x16xf32>
    %cst_5 = arith.constant 1.000000e+00 : f32
    %8 = vector.broadcast %cst_5 : f32 to vector<256x16xf32>
    %9 = arith.addf %8, %7 : vector<256x16xf32>
    %10 = arith.divf %8, %9 : vector<256x16xf32>
    %11 = arith.mulf %5, %10 : vector<256x16xf32>
    %12 = arith.truncf %11 : vector<256x16xf32> to vector<256x16xbf16>
    %c0_6 = arith.constant 0 : index
    %c0_7 = arith.constant 0 : index
    %13 = vector.load %arg4[%c0_6, %c0_7] : memref<256x16xbf16, #tpu.memory_space<vmem>>, vector<256x16xbf16>
    tpu.vector_store %arg4[%c0_6, %c0_7], %12 {strides = array<i32>} : memref<256x16xbf16, #tpu.memory_space<vmem>>, vector<256x16xbf16>,
    return
  }
  func.func @transform_0(%arg0: i32) -> (i32, i32) {
    %c0_i32 = arith.constant 0 : i32
    %c0_i32_0 = arith.constant 0 : i32
    return %arg0, %c0_i32 : i32, i32
  }
  func.func @transform_1(%arg0: i32) -> (i32, i32) {
    %c0_i32 = arith.constant 0 : i32
    %c0_i32_0 = arith.constant 0 : i32
    %c0_i32_1 = arith.constant 0 : i32
    return %c0_i32, %c0_i32_0 : i32, i32
  }
  func.func @transform_2(%arg0: i32) -> (i32, i32) {
    %c0_i32 = arith.constant 0 : i32
    %c0_i32_0 = arith.constant 0 : i32
    %c0_i32_1 = arith.constant 0 : i32
    return %c0_i32, %c0_i32_0 : i32, i32
  }
  func.func @transform_3(%arg0: i32) -> (i32, i32) {
    %c0_i32 = arith.constant 0 : i32
    %c0_i32_0 = arith.constant 0 : i32
    return %arg0, %c0_i32 : i32, i32
  }
}

</mosaic_0001>

<llo_original>
// kernel: tpu_custom_call.1
$region0: #{tpu_custom_call.1}
  #allocation0 [shape = 'u32[]', space=smem, size = 0x4, offset = 0x4, fixed_abs, tag = 'smem constant byte address 0x4 - core index']
  #allocation1 [shape = 'u32[144,128]{1,0:T(1,128)}', space=vmem, size = 0x12000, scoped, tag = 'internal scratch']
  %s0 = inlined_call_operand.vmem [shape: bf16[512,16], index: 0, kind: input, shape index: {}]
  %s1 = inlined_call_operand.vmem [shape: bf16[16,16], index: 1, kind: input, shape index: {}]
  %s2 = inlined_call_operand.vmem [shape: f32[1,16], index: 2, kind: input, shape index: {}]
  %s3 = inlined_call_operand.vmem [shape: bf16[512,16], index: 3, kind: output, shape index: {}]
  %s4 = sld [smem:[#allocation0]]
  $region45: #{tpu_custom_call.1} parent=0
    _
  %s6 = ssub.s32 1, %s4
  %s7 = scalar_select 0, %s6, %s4
  loop: start=0, step=1, limit=4
  $region2: #{tpu_custom_call.1} parent=0 // loop_pre_header
    _
  $region3: #{tpu_custom_call.1} parent=0 // loop_header
    %s9 = sphi 0, %s13
    %p10 = scmp.ge.s32.totalorder %s9, 4
    %s19 = sphi 0, %s21
    %s22 = sphi 0, %s19
    %s23 = sphi 0, %s22
    %s39 = sphi 0, %s23
    %s43 = sphi 0, %s43
    %s45 = sphi 0, %s43
    %s46 = sphi 0, %s45
    %s60 = sphi 0, %s46
    %s64 = sphi 0, %s64
    %s66 = sphi 0, %s64
    %s67 = sphi 0, %s66
    %s81 = sphi 0, %s67
    %s87 = sphi 0, %s89
    %s90 = sphi 0, %s87
    %s91 = sphi 0, %s90
    %s107 = sphi 0, %s91
  $region4: #{tpu_custom_call.1} parent=0 // loop_header_branch
    %12 = sbr.rel (%p10) target = $region8
  $region5: #{tpu_custom_call.1} parent=0 // loop_body
    %s14 = ssub.s32 %s9, 1
    %s15 = ssub.s32 %s9, 2
    %s16 = sadd.s32 %s9, 1
    %s17 = ssub.s32 %s9, %s16
    %p18 = scmp.eq.s32.totalorder %s17, 0
    %s20 = sadd.s32 %s19, 1
    %s21 = scalar_select %p18, %s19, %s20
    %p24 = pneg %p18
    %p25 = scmp.eq.s32.totalorder %s9, 1
    %p26 = por %p24, %p25
    %p27 = scmp.ne.s32.totalorder %s19, %s22
    %p28 = scmp.eq.s32.totalorder %s9, 0
    %p29 = por %p27, %p28
    %p30 = scmp.ne.s32.totalorder %s19, %s22
    %p31 = scmp.eq.s32.totalorder %s14, 1
    %p32 = por %p30, %p31
    %p33 = scmp.ne.s32.totalorder %s22, %s23
    %p34 = scmp.eq.s32.totalorder %s14, 0
    %p35 = por %p33, %p34
    %p36 = scmp.ne.s32.totalorder %s22, %s23
    %p37 = scmp.eq.s32.totalorder %s15, 1
    %p38 = por %p36, %p37
    %p40 = scmp.ne.s32.totalorder %s23, %s39
    %p41 = scmp.eq.s32.totalorder %s15, 0
    %p42 = por %p40, %p41
    %s44 = sadd.s32 %s43, 1
    %p47 = scmp.eq.s32.totalorder %s9, 1
    %p48 = scmp.ne.s32.totalorder %s43, %s45
    %p49 = scmp.eq.s32.totalorder %s9, 0
    %p50 = por %p48, %p49
    %p51 = scmp.ne.s32.totalorder %s43, %s45
    %p52 = scmp.eq.s32.totalorder %s14, 1
    %p53 = por %p51, %p52
    %p54 = scmp.ne.s32.totalorder %s45, %s46
    %p55 = scmp.eq.s32.totalorder %s14, 0
    %p56 = por %p54, %p55
    %p57 = scmp.ne.s32.totalorder %s45, %s46
    %p58 = scmp.eq.s32.totalorder %s15, 1
    %p59 = por %p57, %p58
    %p61 = scmp.ne.s32.totalorder %s46, %s60
    %p62 = scmp.eq.s32.totalorder %s15, 0
    %p63 = por %p61, %p62
    %s65 = sadd.s32 %s64, 1
    %p68 = scmp.eq.s32.totalorder %s9, 1
    %p69 = scmp.ne.s32.totalorder %s64, %s66
    %p70 = scmp.eq.s32.totalorder %s9, 0
    %p71 = por %p69, %p70
    %p72 = scmp.ne.s32.totalorder %s64, %s66
    %p73 = scmp.eq.s32.totalorder %s14, 1
    %p74 = por %p72, %p73
    %p75 = scmp.ne.s32.totalorder %s66, %s67
    %p76 = scmp.eq.s32.totalorder %s14, 0
    %p77 = por %p75, %p76
    %p78 = scmp.ne.s32.totalorder %s66, %s67
    %p79 = scmp.eq.s32.totalorder %s15, 1
    %p80 = por %p78, %p79
    %p82 = scmp.ne.s32.totalorder %s67, %s81
    %p83 = scmp.eq.s32.totalorder %s15, 0
    %p84 = por %p82, %p83
    %s85 = ssub.s32 %s9, %s16
    %p86 = scmp.eq.s32.totalorder %s85, 0
    %s88 = sadd.s32 %s87, 1
    %s89 = scalar_select %p86, %s87, %s88
    %p92 = pneg %p86
    %p93 = scmp.eq.s32.totalorder %s9, 1
    %p94 = por %p92, %p93
    %p95 = scmp.ne.s32.totalorder %s87, %s90
    %p96 = scmp.eq.s32.totalorder %s9, 0
    %p97 = por %p95, %p96
    %p98 = scmp.ne.s32.totalorder %s87, %s90
    %p99 = scmp.eq.s32.totalorder %s14, 1
    %p100 = por %p98, %p99
    %p101 = scmp.ne.s32.totalorder %s90, %s91
    %p102 = scmp.eq.s32.totalorder %s14, 0
    %p103 = por %p101, %p102
    %p104 = scmp.ne.s32.totalorder %s90, %s91
    %p105 = scmp.eq.s32.totalorder %s15, 1
    %p106 = por %p104, %p105
    %p108 = scmp.ne.s32.totalorder %s91, %s107
    %p109 = scmp.eq.s32.totalorder %s15, 0
    %p110 = por %p108, %p109
    %p111 = scmp.le.s32.totalorder 1, %s9
    %p112 = scmp.lt.s32.totalorder %s9, 3
    %p113 = pnand %p111, %p112
    %p114 = pneg %p113
    // Predicated region
    $region9: #{tpu_custom_call.1} parent=5 // pred_check
      _
    $region10: #{tpu_custom_call.1} parent=5 // pred_check_branch
      %116 = sbr.rel (%p113) target = $region12
    $region11: #{tpu_custom_call.1} parent=5 // pred_region
      %s117 = ssub.s32 %s9, 1
      // Predicated region
      $region13: #{tpu_custom_call.1} parent=11 // pred_check
        %p118 = pneg %p56
      $region14: #{tpu_custom_call.1} parent=11 // pred_check_branch
        %120 = sbr.rel (%p118) target = $region16
      $region15: #{tpu_custom_call.1} parent=11 // pred_region
        _
      $region16: #{tpu_custom_call.1} parent=11 // pred_fallthru
        _
      // Predicated region
      $region17: #{tpu_custom_call.1} parent=11 // pred_check
        %p121 = pneg %p77
      $region18: #{tpu_custom_call.1} parent=11 // pred_check_branch
        %123 = sbr.rel (%p121) target = $region20
      $region19: #{tpu_custom_call.1} parent=11 // pred_region
        _
      $region20: #{tpu_custom_call.1} parent=11 // pred_fallthru
        _
    $region12: #{tpu_custom_call.1} parent=5 // pred_fallthru
      _
    %p124 = scmp.lt.s32.totalorder %s9, 2
    // Predicated region
    $region21: #{tpu_custom_call.1} parent=5 // pred_check
      %p125 = pneg %p124
    $region22: #{tpu_custom_call.1} parent=5 // pred_check_branch
      %127 = sbr.rel (%p125) target = $region24
    $region23: #{tpu_custom_call.1} parent=5 // pred_region
      // Predicated region
      $region25: #{tpu_custom_call.1} parent=23 // pred_check
        %p128 = pneg %p29
      $region26: #{tpu_custom_call.1} parent=23 // pred_check_branch
        %130 = sbr.rel (%p128) target = $region28
      $region27: #{tpu_custom_call.1} parent=23 // pred_region
        %s131 = smul.u32 32, %s9
        %p132 = scmp.lt.s32.totalorder %s131, 63
        %s133 = scalar_select %p132, %s131, 63
        %s134 = smul.addr %s133, 4
        %s135 = scalar_lea.vmem %s0, %s134
        %s136 = smul.u32 32, %s9
      $region28: #{tpu_custom_call.1} parent=23 // pred_fallthru
        _
    $region24: #{tpu_custom_call.1} parent=5 // pred_fallthru
      _
    %p137 = scmp.le.s32.totalorder 1, %s9
    %p138 = scmp.lt.s32.totalorder %s9, 3
    %p139 = pnand %p137, %p138
    %p140 = pneg %p139
    // Predicated region
    $region29: #{tpu_custom_call.1} parent=5 // pred_check
      _
    $region30: #{tpu_custom_call.1} parent=5 // pred_check_branch
      %142 = sbr.rel (%p139) target = $region32
    $region31: #{tpu_custom_call.1} parent=5 // pred_region
      %s143 = ssub.s32 %s9, 1
      %s144 = smul.u32 32, %s14
      %p145 = scmp.lt.s32.totalorder %s144, 63
      %s146 = scalar_select %p145, %s144, 63
      %s147 = smul.addr %s146, 4
      %s148 = scalar_lea.vmem %s0, %s147
      %p149 = pneg %p35
      %p150 = pneg %p32
      %p151 = pneg %p56
      %p152 = pneg %p53
      %p153 = pneg %p77
      %p154 = pneg %p74
      %p155 = pneg %p103
      %p156 = pneg %p100
      %s157 = smul.u32 32, %s14
      %p158 = scmp.lt.s32.totalorder %s157, 63
      %s159 = scalar_select %p158, %s157, 63
      %s160 = smul.addr %s159, 4
      %s161 = scalar_lea.vmem %s3, %s160
      %s162 = smul.u32 32, %s14
      %p163 = scmp.lt.s32.totalorder %s162, 63
      %s164 = scalar_select %p163, %s162, 63
      %s165 = smul.addr %s164, 4
      %s166 = scalar_lea.vmem %s0, %s165
      %s167 = smul.u32 32, %s14
      %s168 = smul.u32 32, %s14
      %p169 = scmp.lt.s32.totalorder %s168, 63
      %s170 = scalar_select %p169, %s168, 63
      %s171 = smul.addr %s170, 4
      %s172 = scalar_lea.vmem %s3, %s171
      %s173 = smul.u32 32, %s14
      %v175 = vld [vmem:[%s166] sm:$0xf]
      %v176 = vld [vmem:[%s166 + $0x4] sm:$0xf]
      %v177 = vld [vmem:[%s166 + $0x8] sm:$0xf]
      %v178 = vld [vmem:[%s166 + $0xc] sm:$0xf]
      %v179 = vld [vmem:[%s166 + $0x10] sm:$0xf]
      %v180 = vld [vmem:[%s166 + $0x14] sm:$0xf]
      %v181 = vld [vmem:[%s166 + $0x18] sm:$0xf]
      %v182 = vld [vmem:[%s166 + $0x1c] sm:$0xf]
      %v183 = vld [vmem:[%s166 + $0x20] sm:$0xf]
      %v184 = vld [vmem:[%s166 + $0x24] sm:$0xf]
      %v185 = vld [vmem:[%s166 + $0x28] sm:$0xf]
      %v186 = vld [vmem:[%s166 + $0x2c] sm:$0xf]
      %v187 = vld [vmem:[%s166 + $0x30] sm:$0xf]
      %v188 = vld [vmem:[%s166 + $0x34] sm:$0xf]
      %v189 = vld [vmem:[%s166 + $0x38] sm:$0xf]
      %v190 = vld [vmem:[%s166 + $0x3c] sm:$0xf]
      %v191 = vld [vmem:[%s166 + $0x40] sm:$0xf]
      %v192 = vld [vmem:[%s166 + $0x44] sm:$0xf]
      %v193 = vld [vmem:[%s166 + $0x48] sm:$0xf]
      %v194 = vld [vmem:[%s166 + $0x4c] sm:$0xf]
      %v195 = vld [vmem:[%s166 + $0x50] sm:$0xf]
      %v196 = vld [vmem:[%s166 + $0x54] sm:$0xf]
      %v197 = vld [vmem:[%s166 + $0x58] sm:$0xf]
      %v198 = vld [vmem:[%s166 + $0x5c] sm:$0xf]
      %v199 = vld [vmem:[%s166 + $0x60] sm:$0xf]
      %v200 = vld [vmem:[%s166 + $0x64] sm:$0xf]
      %v201 = vld [vmem:[%s166 + $0x68] sm:$0xf]
      %v202 = vld [vmem:[%s166 + $0x6c] sm:$0xf]
      %v203 = vld [vmem:[%s166 + $0x70] sm:$0xf]
      %v204 = vld [vmem:[%s166 + $0x74] sm:$0xf]
      %v205 = vld [vmem:[%s166 + $0x78] sm:$0xf]
      %v206 = vld [vmem:[%s166 + $0x7c] sm:$0xf]
      %v207 = vld [vmem:[%s1] sm:$0xf]
      %v208 = vld [vmem:[%s1 + $0x4] sm:$0xf]
      %v209 = vld [vmem:[%s2] sm:$0x1]
      %v211 = vlaneseq
      %v212 = vshrl.u32 %v211, 7
      %v213 = vsub.s32 0, %v212
      %v214 = vrot.slane %v209, %v213
      %v248 = vunpack.c.l.b16 %v175
      %v249 = vunpack.c.l.b16 %v176
      %v250 = vunpack.c.l.b16 %v177
      %v251 = vunpack.c.l.b16 %v178
      %v252 = vunpack.c.l.b16 %v179
      %v253 = vunpack.c.l.b16 %v180
      %v254 = vunpack.c.l.b16 %v181
      %v255 = vunpack.c.l.b16 %v182
      %v256 = vunpack.c.l.b16 %v183
      %v257 = vunpack.c.l.b16 %v184
      %v258 = vunpack.c.l.b16 %v185
      %v259 = vunpack.c.l.b16 %v186
      %v260 = vunpack.c.l.b16 %v187
      %v261 = vunpack.c.l.b16 %v188
      %v262 = vunpack.c.l.b16 %v189
      %v263 = vunpack.c.l.b16 %v190
      %v264 = vunpack.c.l.b16 %v191
      %v265 = vunpack.c.l.b16 %v192
      %v266 = vunpack.c.l.b16 %v193
      %v267 = vunpack.c.l.b16 %v194
      %v268 = vunpack.c.l.b16 %v195
      %v269 = vunpack.c.l.b16 %v196
      %v270 = vunpack.c.l.b16 %v197
      %v271 = vunpack.c.l.b16 %v198
      %v272 = vunpack.c.l.b16 %v199
      %v273 = vunpack.c.l.b16 %v200
      %v274 = vunpack.c.l.b16 %v201
      %v275 = vunpack.c.l.b16 %v202
      %v276 = vunpack.c.l.b16 %v203
      %v277 = vunpack.c.l.b16 %v204
      %v278 = vunpack.c.l.b16 %v205
      %v279 = vunpack.c.l.b16 %v206
      %v280 = vpack.c.b16 %v249, %v248
      %v281 = vpack.c.b16 %v251, %v250
      %v282 = vpack.c.b16 %v253, %v252
      %v283 = vpack.c.b16 %v255, %v254
      %v284 = vpack.c.b16 %v257, %v256
      %v285 = vpack.c.b16 %v259, %v258
      %v286 = vpack.c.b16 %v261, %v260
      %v287 = vpack.c.b16 %v263, %v262
      %v288 = vpack.c.b16 %v265, %v264
      %v289 = vpack.c.b16 %v267, %v266
      %v290 = vpack.c.b16 %v269, %v268
      %v291 = vpack.c.b16 %v271, %v270
      %v292 = vpack.c.b16 %v273, %v272
      %v293 = vpack.c.b16 %v275, %v274
      %v294 = vpack.c.b16 %v277, %v276
      %v295 = vpack.c.b16 %v279, %v278
      %v298 = vunpack.c.l.b16 %v207
      %v299 = vunpack.c.l.b16 %v208
      %v300 = vpack.c.b16 %v299, %v298
      %vm302 = vcmask 130048
      %v304 = vsel %vm302, %v280, 0
      %v307 = vsel %vm302, %v281, 0
      %v310 = vsel %vm302, %v282, 0
      %v313 = vsel %vm302, %v283, 0
      %v316 = vsel %vm302, %v284, 0
      %v319 = vsel %vm302, %v285, 0
      %v322 = vsel %vm302, %v286, 0
      %v325 = vsel %vm302, %v287, 0
      %v328 = vsel %vm302, %v288, 0
      %v331 = vsel %vm302, %v289, 0
      %v334 = vsel %vm302, %v290, 0
      %v337 = vsel %vm302, %v291, 0
      %v340 = vsel %vm302, %v292, 0
      %v343 = vsel %vm302, %v293, 0
      %v346 = vsel %vm302, %v294, 0
      %v349 = vsel %vm302, %v295, 0
      %351 = vmatprep.subr.bf16.mxu0 0
      %352 = vmatpush1.bf16.msra.mxu0 %v300
      %353 = vmatprep.subr.bf16.mxu0 0
      %354 = vmatpush1.bf16.msra.mxu0 0
      %355 = vmatprep.subr.bf16.mxu0 0
      %356 = vmatpush1.bf16.msra.mxu0 0
      %357 = vmatprep.subr.bf16.mxu0 0
      %358 = vmatpush1.bf16.msra.mxu0 0
      %359 = vmatprep.subr.bf16.mxu0 0
      %360 = vmatpush1.bf16.msra.mxu0 0
      %361 = vmatprep.subr.bf16.mxu0 0
      %362 = vmatpush1.bf16.msra.mxu0 0
      %363 = vmatprep.subr.bf16.mxu0 0
      %364 = vmatpush1.bf16.msra.mxu0 0
      %365 = vmatprep.subr.bf16.mxu0 0
      %366 = vmatpush1.bf16.msra.mxu0 0
      %367 = vmatprep.subr.bf16.mxu0 0
      %368 = vmatpush1.bf16.msra.mxu0 0
      %369 = vmatprep.subr.bf16.mxu0 0
      %370 = vmatpush1.bf16.msra.mxu0 0
      %371 = vmatprep.subr.bf16.mxu0 0
      %372 = vmatpush1.bf16.msra.mxu0 0
      %373 = vmatprep.subr.bf16.mxu0 0
      %374 = vmatpush1.bf16.msra.mxu0 0
      %375 = vmatprep.subr.bf16.mxu0 0
      %376 = vmatpush1.bf16.msra.mxu0 0
      %377 = vmatprep.subr.bf16.mxu0 0
      %378 = vmatpush1.bf16.msra.mxu0 0
      %379 = vmatprep.subr.bf16.mxu0 0
      %380 = vmatpush1.bf16.msra.mxu0 0
      %381 = vmatprep.subr.bf16.mxu0 0
      %382 = vmatpush1.bf16.msra.mxu0 0
      %383 = vmatprep.mubr.bf16.mxu0 0
      %384 = vmatmul.mubr.bf16.gmra.mrb[0].mxu0 %v304
      %v385 = vpop.f32.mrb[0].mxu0
      %v386 = vadd.f32 %v214, %v385
      %v387 = vpop.f32.mrb[0].mxu0
      %v388 = vpop.f32.mrb[0].mxu0
      %v389 = vadd.f32 %v214, %v388
      %v390 = vpop.f32.mrb[0].mxu0
      %391 = vmatprep.mubr.bf16.mxu0 0
      %392 = vmatmul.mubr.bf16.gmra.mrb[0].mxu0 %v307
      %v393 = vpop.f32.mrb[0].mxu0
      %v394 = vadd.f32 %v214, %v393
      %v395 = vpop.f32.mrb[0].mxu0
      %v396 = vpop.f32.mrb[0].mxu0
      %v397 = vadd.f32 %v214, %v396
      %v398 = vpop.f32.mrb[0].mxu0
      %399 = vmatprep.mubr.bf16.mxu0 0
      %400 = vmatmul.mubr.bf16.gmra.mrb[0].mxu0 %v310
      %v401 = vpop.f32.mrb[0].mxu0
      %v402 = vadd.f32 %v214, %v401
      %v403 = vpop.f32.mrb[0].mxu0
      %v404 = vpop.f32.mrb[0].mxu0
      %v405 = vadd.f32 %v214, %v404
      %v406 = vpop.f32.mrb[0].mxu0
      %407 = vmatprep.mubr.bf16.mxu0 0
      %408 = vmatmul.mubr.bf16.gmra.mrb[0].mxu0 %v313
      %v409 = vpop.f32.mrb[0].mxu0
      %v410 = vadd.f32 %v214, %v409
      %v411 = vpop.f32.mrb[0].mxu0
      %v412 = vpop.f32.mrb[0].mxu0
      %v413 = vadd.f32 %v214, %v412
      %v414 = vpop.f32.mrb[0].mxu0
      %415 = vmatprep.mubr.bf16.mxu0 0
      %416 = vmatmul.mubr.bf16.gmra.mrb[0].mxu0 %v316
      %v417 = vpop.f32.mrb[0].mxu0
      %v418 = vadd.f32 %v214, %v417
      %v419 = vpop.f32.mrb[0].mxu0
      %v420 = vpop.f32.mrb[0].mxu0
      %v421 = vadd.f32 %v214, %v420
      %v422 = vpop.f32.mrb[0].mxu0
      %423 = vmatprep.mubr.bf16.mxu0 0
      %424 = vmatmul.mubr.bf16.gmra.mrb[0].mxu0 %v319
      %v425 = vpop.f32.mrb[0].mxu0
      %v426 = vadd.f32 %v214, %v425
      %v427 = vpop.f32.mrb[0].mxu0
      %v428 = vpop.f32.mrb[0].mxu0
      %v429 = vadd.f32 %v214, %v428
      %v430 = vpop.f32.mrb[0].mxu0
      %431 = vmatprep.mubr.bf16.mxu0 0
      %432 = vmatmul.mubr.bf16.gmra.mrb[0].mxu0 %v322
      %v433 = vpop.f32.mrb[0].mxu0
      %v434 = vadd.f32 %v214, %v433
      %v435 = vpop.f32.mrb[0].mxu0
      %v436 = vpop.f32.mrb[0].mxu0
      %v437 = vadd.f32 %v214, %v436
      %v438 = vpop.f32.mrb[0].mxu0
      %439 = vmatprep.mubr.bf16.mxu0 0
      %440 = vmatmul.mubr.bf16.gmra.mrb[0].mxu0 %v325
      %v441 = vpop.f32.mrb[0].mxu0
      %v442 = vadd.f32 %v214, %v441
      %v443 = vpop.f32.mrb[0].mxu0
      %v444 = vpop.f32.mrb[0].mxu0
      %v445 = vadd.f32 %v214, %v444
      %v446 = vpop.f32.mrb[0].mxu0
      %447 = vmatprep.mubr.bf16.mxu0 0
      %448 = vmatmul.mubr.bf16.gmra.mrb[0].mxu0 %v328
      %v449 = vpop.f32.mrb[0].mxu0
      %v450 = vadd.f32 %v214, %v449
      %v451 = vpop.f32.mrb[0].mxu0
      %v452 = vpop.f32.mrb[0].mxu0
      %v453 = vadd.f32 %v214, %v452
      %v454 = vpop.f32.mrb[0].mxu0
      %455 = vmatprep.mubr.bf16.mxu0 0
      %456 = vmatmul.mubr.bf16.gmra.mrb[0].mxu0 %v331
      %v457 = vpop.f32.mrb[0].mxu0
      %v458 = vadd.f32 %v214, %v457
      %v459 = vpop.f32.mrb[0].mxu0
      %v460 = vpop.f32.mrb[0].mxu0
      %v461 = vadd.f32 %v214, %v460
      %v462 = vpop.f32.mrb[0].mxu0
      %463 = vmatprep.mubr.bf16.mxu0 0
      %464 = vmatmul.mubr.bf16.gmra.mrb[0].mxu0 %v334
      %v465 = vpop.f32.mrb[0].mxu0
      %v466 = vadd.f32 %v214, %v465
      %v467 = vpop.f32.mrb[0].mxu0
      %v468 = vpop.f32.mrb[0].mxu0
      %v469 = vadd.f32 %v214, %v468
      %v470 = vpop.f32.mrb[0].mxu0
      %471 = vmatprep.mubr.bf16.mxu0 0
      %472 = vmatmul.mubr.bf16.gmra.mrb[0].mxu0 %v337
      %v473 = vpop.f32.mrb[0].mxu0
      %v474 = vadd.f32 %v214, %v473
      %v475 = vpop.f32.mrb[0].mxu0
      %v476 = vpop.f32.mrb[0].mxu0
      %v477 = vadd.f32 %v214, %v476
      %v478 = vpop.f32.mrb[0].mxu0
      %479 = vmatprep.mubr.bf16.mxu0 0
      %480 = vmatmul.mubr.bf16.gmra.mrb[0].mxu0 %v340
      %v481 = vpop.f32.mrb[0].mxu0
      %v482 = vadd.f32 %v214, %v481
      %v483 = vpop.f32.mrb[0].mxu0
      %v484 = vpop.f32.mrb[0].mxu0
      %v485 = vadd.f32 %v214, %v484
      %v486 = vpop.f32.mrb[0].mxu0
      %487 = vmatprep.mubr.bf16.mxu0 0
      %488 = vmatmul.mubr.bf16.gmra.mrb[0].mxu0 %v343
      %v489 = vpop.f32.mrb[0].mxu0
      %v490 = vadd.f32 %v214, %v489
      %v491 = vpop.f32.mrb[0].mxu0
      %v492 = vpop.f32.mrb[0].mxu0
      %v493 = vadd.f32 %v214, %v492
      %v494 = vpop.f32.mrb[0].mxu0
      %495 = vmatprep.mubr.bf16.mxu0 0
      %496 = vmatmul.mubr.bf16.gmra.mrb[0].mxu0 %v346
      %v497 = vpop.f32.mrb[0].mxu0
      %v498 = vadd.f32 %v214, %v497
      %v499 = vpop.f32.mrb[0].mxu0
      %v500 = vpop.f32.mrb[0].mxu0
      %v501 = vadd.f32 %v214, %v500
      %v502 = vpop.f32.mrb[0].mxu0
      %503 = vmatprep.mubr.bf16.mxu0 0
      %504 = vmatmul.mubr.bf16.gmra.mrb[0].mxu0 %v349
      %v505 = vpop.f32.mrb[0].mxu0
      %v506 = vadd.f32 %v214, %v505
      %v507 = vpop.f32.mrb[0].mxu0
      %v508 = vpop.f32.mrb[0].mxu0
      %v509 = vadd.f32 %v214, %v508
      %v510 = vpop.f32.mrb[0].mxu0
      %511 = vdwg.mxu0
      %v512 = vxor.u32 %v386, 2147483648
      %v513 = vxor.u32 %v389, 2147483648
      %v514 = vxor.u32 %v394, 2147483648
      %v515 = vxor.u32 %v397, 2147483648
      %v516 = vxor.u32 %v402, 2147483648
      %v517 = vxor.u32 %v405, 2147483648
      %v518 = vxor.u32 %v410, 2147483648
      %v519 = vxor.u32 %v413, 2147483648
      %v520 = vxor.u32 %v418, 2147483648
      %v521 = vxor.u32 %v421, 2147483648
      %v522 = vxor.u32 %v426, 2147483648
      %v523 = vxor.u32 %v429, 2147483648
      %v524 = vxor.u32 %v434, 2147483648
      %v525 = vxor.u32 %v437, 2147483648
      %v526 = vxor.u32 %v442, 2147483648
      %v527 = vxor.u32 %v445, 2147483648
      %v528 = vxor.u32 %v450, 2147483648
      %v529 = vxor.u32 %v453, 2147483648
      %v530 = vxor.u32 %v458, 2147483648
      %v531 = vxor.u32 %v461, 2147483648
      %v532 = vxor.u32 %v466, 2147483648
      %v533 = vxor.u32 %v469, 2147483648
      %v534 = vxor.u32 %v474, 2147483648
      %v535 = vxor.u32 %v477, 2147483648
      %v536 = vxor.u32 %v482, 2147483648
      %v537 = vxor.u32 %v485, 2147483648
      %v538 = vxor.u32 %v490, 2147483648
      %v539 = vxor.u32 %v493, 2147483648
      %v540 = vxor.u32 %v498, 2147483648
      %v541 = vxor.u32 %v501, 2147483648
      %v542 = vxor.u32 %v506, 2147483648
      %v543 = vxor.u32 %v509, 2147483648
      %v544 = vmul.f32 %v512, 1.442695
      %v545 = vpow.pop %v544
      %v546 = vmul.f32 %v513, 1.442695
      %v547 = vpow.pop %v546
      %v548 = vmul.f32 %v514, 1.442695
      %v549 = vpow.pop %v548
      %v550 = vmul.f32 %v515, 1.442695
      %v551 = vpow.pop %v550
      %v552 = vmul.f32 %v516, 1.442695
      %v553 = vpow.pop %v552
      %v554 = vmul.f32 %v517, 1.442695
      %v555 = vpow.pop %v554
      %v556 = vmul.f32 %v518, 1.442695
      %v557 = vpow.pop %v556
      %v558 = vmul.f32 %v519, 1.442695
      %v559 = vpow.pop %v558
      %v560 = vmul.f32 %v520, 1.442695
      %v561 = vpow.pop %v560
      %v562 = vmul.f32 %v521, 1.442695
      %v563 = vpow.pop %v562
      %v564 = vmul.f32 %v522, 1.442695
      %v565 = vpow.pop %v564
      %v566 = vmul.f32 %v523, 1.442695
      %v567 = vpow.pop %v566
      %v568 = vmul.f32 %v524, 1.442695
      %v569 = vpow.pop %v568
      %v570 = vmul.f32 %v525, 1.442695
      %v571 = vpow.pop %v570
      %v572 = vmul.f32 %v526, 1.442695
      %v573 = vpow.pop %v572
      %v574 = vmul.f32 %v527, 1.442695
      %v575 = vpow.pop %v574
      %v576 = vmul.f32 %v528, 1.442695
      %v577 = vpow.pop %v576
      %v578 = vmul.f32 %v529, 1.442695
      %v579 = vpow.pop %v578
      %v580 = vmul.f32 %v530, 1.442695
      %v581 = vpow.pop %v580
      %v582 = vmul.f32 %v531, 1.442695
      %v583 = vpow.pop %v582
      %v584 = vmul.f32 %v532, 1.442695
      %v585 = vpow.pop %v584
      %v586 = vmul.f32 %v533, 1.442695
      %v587 = vpow.pop %v586
      %v588 = vmul.f32 %v534, 1.442695
      %v589 = vpow.pop %v588
      %v590 = vmul.f32 %v535, 1.442695
      %v591 = vpow.pop %v590
      %v592 = vmul.f32 %v536, 1.442695
      %v593 = vpow.pop %v592
      %v594 = vmul.f32 %v537, 1.442695
      %v595 = vpow.pop %v594
      %v596 = vmul.f32 %v538, 1.442695
      %v597 = vpow.pop %v596
      %v598 = vmul.f32 %v539, 1.442695
      %v599 = vpow.pop %v598
      %v600 = vmul.f32 %v540, 1.442695
      %v601 = vpow.pop %v600
      %v602 = vmul.f32 %v541, 1.442695
      %v603 = vpow.pop %v602
      %v604 = vmul.f32 %v542, 1.442695
      %v605 = vpow.pop %v604
      %v606 = vmul.f32 %v543, 1.442695
      %v607 = vpow.pop %v606
      %v608 = vadd.f32 %v545, 1.0
      %v609 = vadd.f32 %v547, 1.0
      %v610 = vadd.f32 %v549, 1.0
      %v611 = vadd.f32 %v551, 1.0
      %v612 = vadd.f32 %v553, 1.0
      %v613 = vadd.f32 %v555, 1.0
      %v614 = vadd.f32 %v557, 1.0
      %v615 = vadd.f32 %v559, 1.0
      %v616 = vadd.f32 %v561, 1.0
      %v617 = vadd.f32 %v563, 1.0
      %v618 = vadd.f32 %v565, 1.0
      %v619 = vadd.f32 %v567, 1.0
      %v620 = vadd.f32 %v569, 1.0
      %v621 = vadd.f32 %v571, 1.0
      %v622 = vadd.f32 %v573, 1.0
      %v623 = vadd.f32 %v575, 1.0
      %v624 = vadd.f32 %v577, 1.0
      %v625 = vadd.f32 %v579, 1.0
      %v626 = vadd.f32 %v581, 1.0
      %v627 = vadd.f32 %v583, 1.0
      %v628 = vadd.f32 %v585, 1.0
      %v629 = vadd.f32 %v587, 1.0
      %v630 = vadd.f32 %v589, 1.0
      %v631 = vadd.f32 %v591, 1.0
      %v632 = vadd.f32 %v593, 1.0
      %v633 = vadd.f32 %v595, 1.0
      %v634 = vadd.f32 %v597, 1.0
      %v635 = vadd.f32 %v599, 1.0
      %v636 = vadd.f32 %v601, 1.0
      %v637 = vadd.f32 %v603, 1.0
      %v638 = vadd.f32 %v605, 1.0
      %v639 = vadd.f32 %v607, 1.0
      %v640 = vrcp.pop %v608
      %v641 = vmul.f32 1.0, %v640
      %v642 = vrcp.pop %v609
      %v643 = vmul.f32 1.0, %v642
      %v644 = vrcp.pop %v610
      %v645 = vmul.f32 1.0, %v644
      %v646 = vrcp.pop %v611
      %v647 = vmul.f32 1.0, %v646
      %v648 = vrcp.pop %v612
      %v649 = vmul.f32 1.0, %v648
      %v650 = vrcp.pop %v613
      %v651 = vmul.f32 1.0, %v650
      %v652 = vrcp.pop %v614
      %v653 = vmul.f32 1.0, %v652
      %v654 = vrcp.pop %v615
      %v655 = vmul.f32 1.0, %v654
      %v656 = vrcp.pop %v616
      %v657 = vmul.f32 1.0, %v656
      %v658 = vrcp.pop %v617
      %v659 = vmul.f32 1.0, %v658
      %v660 = vrcp.pop %v618
      %v661 = vmul.f32 1.0, %v660
      %v662 = vrcp.pop %v619
      %v663 = vmul.f32 1.0, %v662
      %v664 = vrcp.pop %v620
      %v665 = vmul.f32 1.0, %v664
      %v666 = vrcp.pop %v621
      %v667 = vmul.f32 1.0, %v666
      %v668 = vrcp.pop %v622
      %v669 = vmul.f32 1.0, %v668
      %v670 = vrcp.pop %v623
      %v671 = vmul.f32 1.0, %v670
      %v672 = vrcp.pop %v624
      %v673 = vmul.f32 1.0, %v672
      %v674 = vrcp.pop %v625
      %v675 = vmul.f32 1.0, %v674
      %v676 = vrcp.pop %v626
      %v677 = vmul.f32 1.0, %v676
      %v678 = vrcp.pop %v627
      %v679 = vmul.f32 1.0, %v678
      %v680 = vrcp.pop %v628
      %v681 = vmul.f32 1.0, %v680
      %v682 = vrcp.pop %v629
      %v683 = vmul.f32 1.0, %v682
      %v684 = vrcp.pop %v630
      %v685 = vmul.f32 1.0, %v684
      %v686 = vrcp.pop %v631
      %v687 = vmul.f32 1.0, %v686
      %v688 = vrcp.pop %v632
      %v689 = vmul.f32 1.0, %v688
      %v690 = vrcp.pop %v633
      %v691 = vmul.f32 1.0, %v690
      %v692 = vrcp.pop %v634
      %v693 = vmul.f32 1.0, %v692
      %v694 = vrcp.pop %v635
      %v695 = vmul.f32 1.0, %v694
      %v696 = vrcp.pop %v636
      %v697 = vmul.f32 1.0, %v696
      %v698 = vrcp.pop %v637
      %v699 = vmul.f32 1.0, %v698
      %v700 = vrcp.pop %v638
      %v701 = vmul.f32 1.0, %v700
      %v702 = vrcp.pop %v639
      %v703 = vmul.f32 1.0, %v702
      %v704 = vmul.f32 %v386, %v641
      %v705 = vmul.f32 %v389, %v643
      %v706 = vmul.f32 %v394, %v645
      %v707 = vmul.f32 %v397, %v647
      %v708 = vmul.f32 %v402, %v649
      %v709 = vmul.f32 %v405, %v651
      %v710 = vmul.f32 %v410, %v653
      %v711 = vmul.f32 %v413, %v655
      %v712 = vmul.f32 %v418, %v657
      %v713 = vmul.f32 %v421, %v659
      %v714 = vmul.f32 %v426, %v661
      %v715 = vmul.f32 %v429, %v663
      %v716 = vmul.f32 %v434, %v665
      %v717 = vmul.f32 %v437, %v667
      %v718 = vmul.f32 %v442, %v669
      %v719 = vmul.f32 %v445, %v671
      %v720 = vmul.f32 %v450, %v673
      %v721 = vmul.f32 %v453, %v675
      %v722 = vmul.f32 %v458, %v677
      %v723 = vmul.f32 %v461, %v679
      %v724 = vmul.f32 %v466, %v681
      %v725 = vmul.f32 %v469, %v683
      %v726 = vmul.f32 %v474, %v685
      %v727 = vmul.f32 %v477, %v687
      %v728 = vmul.f32 %v482, %v689
      %v729 = vmul.f32 %v485, %v691
      %v730 = vmul.f32 %v490, %v693
      %v731 = vmul.f32 %v493, %v695
      %v732 = vmul.f32 %v498, %v697
      %v733 = vmul.f32 %v501, %v699
      %v734 = vmul.f32 %v506, %v701
      %v735 = vmul.f32 %v509, %v703
      %v736 = vpack.c.bf16 %v705, %v704
      %v737 = vpack.c.bf16 %v707, %v706
      %v738 = vpack.c.bf16 %v709, %v708
      %v739 = vpack.c.bf16 %v711, %v710
      %v740 = vpack.c.bf16 %v713, %v712
      %v741 = vpack.c.bf16 %v715, %v714
      %v742 = vpack.c.bf16 %v717, %v716
      %v743 = vpack.c.bf16 %v719, %v718
      %v744 = vpack.c.bf16 %v721, %v720
      %v745 = vpack.c.bf16 %v723, %v722
      %v746 = vpack.c.bf16 %v725, %v724
      %v747 = vpack.c.bf16 %v727, %v726
      %v748 = vpack.c.bf16 %v729, %v728
      %v749 = vpack.c.bf16 %v731, %v730
      %v750 = vpack.c.bf16 %v733, %v732
      %v751 = vpack.c.bf16 %v735, %v734
      %v768 = vunpack.c.l.b16 %v736
      %v769 = vunpack.c.h.b16 %v736
      %v770 = vunpack.c.l.b16 %v737
      %v771 = vunpack.c.h.b16 %v737
      %v772 = vunpack.c.l.b16 %v738
      %v773 = vunpack.c.h.b16 %v738
      %v774 = vunpack.c.l.b16 %v739
      %v775 = vunpack.c.h.b16 %v739
      %v776 = vunpack.c.l.b16 %v740
      %v777 = vunpack.c.h.b16 %v740
      %v778 = vunpack.c.l.b16 %v741
      %v779 = vunpack.c.h.b16 %v741
      %v780 = vunpack.c.l.b16 %v742
      %v781 = vunpack.c.h.b16 %v742
      %v782 = vunpack.c.l.b16 %v743
      %v783 = vunpack.c.h.b16 %v743
      %v784 = vunpack.c.l.b16 %v744
      %v785 = vunpack.c.h.b16 %v744
      %v786 = vunpack.c.l.b16 %v745
      %v787 = vunpack.c.h.b16 %v745
      %v788 = vunpack.c.l.b16 %v746
      %v789 = vunpack.c.h.b16 %v746
      %v790 = vunpack.c.l.b16 %v747
      %v791 = vunpack.c.h.b16 %v747
      %v792 = vunpack.c.l.b16 %v748
      %v793 = vunpack.c.h.b16 %v748
      %v794 = vunpack.c.l.b16 %v749
      %v795 = vunpack.c.h.b16 %v749
      %v796 = vunpack.c.l.b16 %v750
      %v797 = vunpack.c.h.b16 %v750
      %v798 = vunpack.c.l.b16 %v751
      %v799 = vunpack.c.h.b16 %v751
      %v800 = vpack.c.b16 %v768, %v768
      %v801 = vpack.c.b16 %v769, %v769
      %v802 = vpack.c.b16 %v770, %v770
      %v803 = vpack.c.b16 %v771, %v771
      %v804 = vpack.c.b16 %v772, %v772
      %v805 = vpack.c.b16 %v773, %v773
      %v806 = vpack.c.b16 %v774, %v774
      %v807 = vpack.c.b16 %v775, %v775
      %v808 = vpack.c.b16 %v776, %v776
      %v809 = vpack.c.b16 %v777, %v777
      %v810 = vpack.c.b16 %v778, %v778
      %v811 = vpack.c.b16 %v779, %v779
      %v812 = vpack.c.b16 %v780, %v780
      %v813 = vpack.c.b16 %v781, %v781
      %v814 = vpack.c.b16 %v782, %v782
      %v815 = vpack.c.b16 %v783, %v783
      %v816 = vpack.c.b16 %v784, %v784
      %v817 = vpack.c.b16 %v785, %v785
      %v818 = vpack.c.b16 %v786, %v786
      %v819 = vpack.c.b16 %v787, %v787
      %v820 = vpack.c.b16 %v788, %v788
      %v821 = vpack.c.b16 %v789, %v789
      %v822 = vpack.c.b16 %v790, %v790
      %v823 = vpack.c.b16 %v791, %v791
      %v824 = vpack.c.b16 %v792, %v792
      %v825 = vpack.c.b16 %v793, %v793
      %v826 = vpack.c.b16 %v794, %v794
      %v827 = vpack.c.b16 %v795, %v795
      %v828 = vpack.c.b16 %v796, %v796
      %v829 = vpack.c.b16 %v797, %v797
      %v830 = vpack.c.b16 %v798, %v798
      %v831 = vpack.c.b16 %v799, %v799
      %vm864 = vcmask 125952
      %865 = vst.msk [vmem:[%s172] sm:$0xf] %vm864, %v800
      %866 = vst.msk [vmem:[%s172 + $0x4] sm:$0xf] %vm864, %v801
      %867 = vst.msk [vmem:[%s172 + $0x8] sm:$0xf] %vm864, %v802
      %868 = vst.msk [vmem:[%s172 + $0xc] sm:$0xf] %vm864, %v803
      %869 = vst.msk [vmem:[%s172 + $0x10] sm:$0xf] %vm864, %v804
      %870 = vst.msk [vmem:[%s172 + $0x14] sm:$0xf] %vm864, %v805
      %871 = vst.msk [vmem:[%s172 + $0x18] sm:$0xf] %vm864, %v806
      %872 = vst.msk [vmem:[%s172 + $0x1c] sm:$0xf] %vm864, %v807
      %873 = vst.msk [vmem:[%s172 + $0x20] sm:$0xf] %vm864, %v808
      %874 = vst.msk [vmem:[%s172 + $0x24] sm:$0xf] %vm864, %v809
      %875 = vst.msk [vmem:[%s172 + $0x28] sm:$0xf] %vm864, %v810
      %876 = vst.msk [vmem:[%s172 + $0x2c] sm:$0xf] %vm864, %v811
      %877 = vst.msk [vmem:[%s172 + $0x30] sm:$0xf] %vm864, %v812
      %878 = vst.msk [vmem:[%s172 + $0x34] sm:$0xf] %vm864, %v813
      %879 = vst.msk [vmem:[%s172 + $0x38] sm:$0xf] %vm864, %v814
      %880 = vst.msk [vmem:[%s172 + $0x3c] sm:$0xf] %vm864, %v815
      %881 = vst.msk [vmem:[%s172 + $0x40] sm:$0xf] %vm864, %v816
      %882 = vst.msk [vmem:[%s172 + $0x44] sm:$0xf] %vm864, %v817
      %883 = vst.msk [vmem:[%s172 + $0x48] sm:$0xf] %vm864, %v818
      %884 = vst.msk [vmem:[%s172 + $0x4c] sm:$0xf] %vm864, %v819
      %885 = vst.msk [vmem:[%s172 + $0x50] sm:$0xf] %vm864, %v820
      %886 = vst.msk [vmem:[%s172 + $0x54] sm:$0xf] %vm864, %v821
      %887 = vst.msk [vmem:[%s172 + $0x58] sm:$0xf] %vm864, %v822
      %888 = vst.msk [vmem:[%s172 + $0x5c] sm:$0xf] %vm864, %v823
      %889 = vst.msk [vmem:[%s172 + $0x60] sm:$0xf] %vm864, %v824
      %890 = vst.msk [vmem:[%s172 + $0x64] sm:$0xf] %vm864, %v825
      %891 = vst.msk [vmem:[%s172 + $0x68] sm:$0xf] %vm864, %v826
      %892 = vst.msk [vmem:[%s172 + $0x6c] sm:$0xf] %vm864, %v827
      %893 = vst.msk [vmem:[%s172 + $0x70] sm:$0xf] %vm864, %v828
      %894 = vst.msk [vmem:[%s172 + $0x74] sm:$0xf] %vm864, %v829
      %895 = vst.msk [vmem:[%s172 + $0x78] sm:$0xf] %vm864, %v830
      %896 = vst.msk [vmem:[%s172 + $0x7c] sm:$0xf] %vm864, %v831
      %s897 = smul.u32 32, %s14
      %p898 = scmp.lt.s32.totalorder %s897, 63
      %s899 = scalar_select %p898, %s897, 63
      %s900 = smul.addr %s899, 4
      %s901 = scalar_lea.vmem %s3, %s900
      // Predicated region
      $region33: #{tpu_custom_call.1} parent=31 // pred_check
        %p902 = pneg %p100
      $region34: #{tpu_custom_call.1} parent=31 // pred_check_branch
        %904 = sbr.rel (%p902) target = $region36
      $region35: #{tpu_custom_call.1} parent=31 // pred_region
        %s905 = smul.u32 32, %s14
      $region36: #{tpu_custom_call.1} parent=31 // pred_fallthru
        _
    $region32: #{tpu_custom_call.1} parent=5 // pred_fallthru
      _
    %p906 = scmp.le.s32.totalorder 2, %s9
    // Predicated region
    $region37: #{tpu_custom_call.1} parent=5 // pred_check
      %p907 = pneg %p906
    $region38: #{tpu_custom_call.1} parent=5 // pred_check_branch
      %909 = sbr.rel (%p907) target = $region40
    $region39: #{tpu_custom_call.1} parent=5 // pred_region
      %s910 = ssub.s32 %s9, 2
      // Predicated region
      $region41: #{tpu_custom_call.1} parent=39 // pred_check
        %p911 = pneg %p106
      $region42: #{tpu_custom_call.1} parent=39 // pred_check_branch
        %913 = sbr.rel (%p911) target = $region44
      $region43: #{tpu_custom_call.1} parent=39 // pred_region
        %s914 = smul.u32 32, %s15
        %p915 = scmp.lt.s32.totalorder %s914, 63
        %s916 = scalar_select %p915, %s914, 63
        %s917 = smul.addr %s916, 4
        %s918 = scalar_lea.vmem %s3, %s917
      $region44: #{tpu_custom_call.1} parent=39 // pred_fallthru
        _
    $region40: #{tpu_custom_call.1} parent=5 // pred_fallthru
      _
  $region6: #{tpu_custom_call.1} parent=0 // loop_footer
    %s13 = sadd.s32 1, %s9
  $region7: #{tpu_custom_call.1} parent=0 // loop_footer_branch
    %8 = sbr.rel target = $region3
  $region8: #{tpu_custom_call.1} parent=0 // loop_exit
    _

</llo_original>
